<compile_context>
chip_gen: v7x
topology: tpu7x:2x2x1
jax: 0.10.0
libtpu: 0.0.40
codegen_flags: <defaults>
</compile_context>

<pallas_src>
import functools

import jax
import jax.numpy as jnp
from jax import lax
from jax.experimental import pallas as pl
from jax.experimental.pallas import tpu as pltpu


def _round_up(x, m):
    return (x + m - 1) // m * m


def _shift(x, dh, dw):
    """y[i, j] = x[(i + dh) mod Hp, (j + dw) mod Wp].

    With >= 2 zero rows/cols of bottom/right padding this circular shift is exactly
    the zero-padded shift for |dh|, |dw| <= 2.  Every use below is direction-symmetric
    (squared Sobel, max-dilation), so the result is independent of roll orientation.
    """
    if dh:
        x = pltpu.roll(x, shift=(-dh) % x.shape[0], axis=0)
    if dw:
        x = pltpu.roll(x, shift=(-dw) % x.shape[1], axis=1)
    return x


def _sobel_sq(tp):
    """Squared Sobel magnitude of F.conv2d(t, sobelx/y, padding=1), separable form."""
    t_l = _shift(tp, 0, -1)               # t[i, j-1]
    t_r = _shift(tp, 0, 1)                # t[i, j+1]
    a = t_l - t_r                         # horizontal [1, 0, -1] pass
    b = t_l + 2.0 * tp + t_r              # horizontal [1, 2, 1] pass
    gx = _shift(a, -1, 0) + 2.0 * a + _shift(a, 1, 0)
    gy = _shift(b, -1, 0) - _shift(b, 1, 0)
    return gx * gx + gy * gy, t_l, t_r


def _dilate3(x, x_l=None, x_r=None):
    """Binary dilation with a 3x3 window (separable 1-D max passes)."""
    if x_l is None:
        x_l = _shift(x, 0, -1)
    if x_r is None:
        x_r = _shift(x, 0, 1)
    m = jnp.maximum(jnp.maximum(x_l, x), x_r)
    return jnp.maximum(jnp.maximum(_shift(m, -1, 0), m), _shift(m, 1, 0))


def _bce_sum(p, t):
    """Sum of BCE terms for a *binary* target (one log per element).

    For t in {0,1} this is bit-identical to torch.nn.BCELoss's per-element term
    -(t*log p + (1-t)*log(1-p)) with the log clamped at -100.
    """
    p_sel = jnp.where(t > 0.5, p, 1.0 - p)
    return jnp.sum(-jnp.maximum(jnp.log(p_sel), -100.0))


def _g2min_kernel(tpad_ref, min_ref, *, H, W):
    """Pre-pass (target only): per-image min of the squared Sobel magnitude."""
    tp = tpad_ref[0].astype(jnp.float32)          # (Hp, Wp)
    g2, _, _ = _sobel_sq(tp)
    m = jnp.min(g2[:H, :W])                       # min over the H x W interior only
    min_ref[0] = jnp.full((8, 128), m, jnp.float32)


def _uunet_loss_kernel(out_ref, d1_ref, d2_ref, sob_ref, tpad_ref, gmin_ref,
                       sums_ref, *, H, W):
    tp = tpad_ref[0].astype(jnp.float32)          # (Hp, Wp) zero-padded target

    # Sobel (squared magnitude) + neighbourhood dilations, all via aligned rolls.
    g2, t_l, t_r = _sobel_sq(tp)
    n1p = _dilate3(tp, t_l, t_r)                  # get_neighbours(t, 1): 3x3 dilation
    n2p = _dilate3(n1p)                           # get_neighbours(t, 2): 5x5 = 3x3 twice

    t = tp[:H, :W]                                # interior slices are offset-0 (aligned)
    n1 = n1p[:H, :W]
    n2 = n2p[:H, :W]

    gmin = gmin_ref[0, 0]                         # global min(grad^2) from the pre-pass
    e = jnp.where(g2[:H, :W] > gmin, 1.0, 0.0)    # == (grad_norm > 0) of the reference
    edge = jnp.where(t * 2.0 - e == 1.0, 1.0, 0.0)

    s1 = _bce_sum(out_ref[0].astype(jnp.float32), t)
    s2 = _bce_sum(d1_ref[0].astype(jnp.float32), n1)
    s3 = _bce_sum(d2_ref[0].astype(jnp.float32), n2)
    s4 = _bce_sum(sob_ref[0].astype(jnp.float32), edge)

    # Lane-dense partial-sum slab: sums land in lanes 0..3 (all sublanes identical).
    lane = lax.broadcasted_iota(jnp.int32, (8, 128), 1)
    slab = (jnp.where(lane == 0, s1, 0.0) + jnp.where(lane == 1, s2, 0.0)
            + jnp.where(lane == 2, s3, 0.0) + jnp.where(lane == 3, s4, 0.0))
    sums_ref[0] = slab


@jax.jit
def uunet_loss(out, d1, d2, soble, targets):
    # out/d1/d2/soble: (B, 1, H, W) probabilities in (0,1); targets: (B, H, W) binary mask.
    B, C, H, W = out.shape
    assert C == 1
    preds = [p.reshape(B, H, W) for p in (out, d1, d2, soble)]   # free reshape, keep dtype

    # Zero-pad the target on the bottom/right only, rounded up to the (8, 128) tile,
    # so in-kernel shifts are aligned rolls and circular wrap passes only through zeros.
    Hp = _round_up(H + 2, 8)
    Wp = _round_up(W + 2, 128)
    t = targets.astype(jnp.float32).reshape(B, H, W)
    tpad = jnp.pad(t, ((0, 0), (0, Hp - H), (0, Wp - W)))

    # Pass 1: global min of grad^2 (target only), so pass 2 stays a single sweep.
    g2min_tiles = pl.pallas_call(
        functools.partial(_g2min_kernel, H=H, W=W),
        out_shape=jax.ShapeDtypeStruct((B, 8, 128), jnp.float32),
        grid=(B,),
        in_specs=[pl.BlockSpec((1, Hp, Wp), lambda b: (b, 0, 0))],
        out_specs=pl.BlockSpec((1, 8, 128), lambda b: (b, 0, 0)),
        compiler_params=pltpu.CompilerParams(dimension_semantics=("parallel",)),
    )(tpad)
    gmin = jnp.min(g2min_tiles).reshape(1, 1)     # scalar, delivered via SMEM

    # Pass 2: per-image BCE partial sums; batch-parallel, pipelined, preds read once.
    block_bytes = 8 * (4 * H * W + Hp * Wp + 8 * 128)           # f32, double-buffered
    vmem_limit = int(min(48 << 20, max(4 * block_bytes, 16 << 20)))
    sums = pl.pallas_call(
        functools.partial(_uunet_loss_kernel, H=H, W=W),
        out_shape=jax.ShapeDtypeStruct((B, 8, 128), jnp.float32),
        grid=(B,),
        in_specs=[pl.BlockSpec((1, H, W), lambda b: (b, 0, 0))] * 4
                 + [pl.BlockSpec((1, Hp, Wp), lambda b: (b, 0, 0)),
                    pl.BlockSpec(memory_space=pltpu.MemorySpace.SMEM)],
        out_specs=pl.BlockSpec((1, 8, 128), lambda b: (b, 0, 0)),
        compiler_params=pltpu.CompilerParams(
            dimension_semantics=("parallel",),
            vmem_limit_bytes=vmem_limit),
    )(*preds, tpad, gmin)

    # Tiny final reduction: the four BCE means share the same denominator B*H*W.
    total = jnp.sum(sums[:, 0, :4])
    return total / jnp.float32(B * H * W)


if __name__ == "__main__":
    key = jax.random.PRNGKey(0)
    B, C, H, W = 2, 1, 16, 16
    k_out, k_d1, k_d2, k_sob, k_t = jax.random.split(key, 5)

    # network outputs are sigmoid probabilities
    out = jax.nn.sigmoid(jax.random.normal(k_out, (B, C, H, W), jnp.float32))
    d1 = jax.nn.sigmoid(jax.random.normal(k_d1, (B, C, H, W), jnp.float32))
    d2 = jax.nn.sigmoid(jax.random.normal(k_d2, (B, C, H, W), jnp.float32))
    soble = jax.nn.sigmoid(jax.random.normal(k_sob, (B, C, H, W), jnp.float32))
    # binary ground-truth mask
    targets = (jax.random.uniform(k_t, (B, H, W)) > 0.5).astype(jnp.float32)

    loss = uunet_loss(out, d1, d2, soble, targets)
    jax.block_until_ready(loss)
    assert jnp.isfinite(loss)
    print("KERNEL_OK")
</pallas_src>

<mosaic_0001>
module attributes {stable_mosaic.version = 11 : i64} {
  func.func @_uunet_loss_kernel(%arg0: i32, %arg1: memref<1x16x16xf32, #tpu.memory_space<vmem>>, %arg2: memref<1x16x16xf32, #tpu.memory_space<vmem>>, %arg3: memref<1x16x16xf32, #tpu.memory_space<vmem>>, %arg4: memref<1x16x16xf32, #tpu.memory_space<vmem>>, %arg5: memref<1x24x128xf32, #tpu.memory_space<vmem>>, %arg6: memref<1x1xf32, #tpu.memory_space<smem>>, %arg7: memref<1x8x128xf32, #tpu.memory_space<vmem>>) attributes {dimension_semantics = [#tpu.dimension_semantics<parallel>], iteration_bounds = array<i64: 2>, scalar_prefetch = 0 : i64, scratch_operands = 0 : i64, tpu.core_type = #tpu.core_type<tc>, window_params = [{transform_indices = @transform_0, window_bounds = array<i64: 1, 16, 16>}, {transform_indices = @transform_1, window_bounds = array<i64: 1, 16, 16>}, {transform_indices = @transform_2, window_bounds = array<i64: 1, 16, 16>}, {transform_indices = @transform_3, window_bounds = array<i64: 1, 16, 16>}, {transform_indices = @transform_4, window_bounds = array<i64: 1, 24, 128>}, {transform_indices = @transform_5, window_bounds = array<i64: 1, 1>}, {transform_indices = @transform_6, window_bounds = array<i64: 1, 8, 128>}]} {
    %c0 = arith.constant 0 : index
    %c0_0 = arith.constant 0 : index
    %c0_1 = arith.constant 0 : index
    %0 = vector.load %arg5[%c0, %c0_0, %c0_1] : memref<1x24x128xf32, #tpu.memory_space<vmem>>, vector<1x24x128xf32>
    %1 = vector.shape_cast %0 : vector<1x24x128xf32> to vector<24x128xf32>
    %c1_i32 = arith.constant 1 : i32
    %2 = tpu.dynamic_rotate %1 by %c1_i32 dim 1 : vector<24x128xf32>, i32 -> vector<24x128xf32>
    %c127_i32 = arith.constant 127 : i32
    %3 = tpu.dynamic_rotate %1 by %c127_i32 dim 1 : vector<24x128xf32>, i32 -> vector<24x128xf32>
    %4 = arith.subf %2, %3 : vector<24x128xf32>
    %cst = arith.constant 2.000000e+00 : f32
    %5 = vector.broadcast %cst : f32 to vector<24x128xf32>
    %6 = arith.mulf %5, %1 : vector<24x128xf32>
    %7 = arith.addf %2, %6 : vector<24x128xf32>
    %8 = arith.addf %7, %3 : vector<24x128xf32>
    %c1_i32_2 = arith.constant 1 : i32
    %9 = tpu.dynamic_rotate %4 by %c1_i32_2 dim 0 : vector<24x128xf32>, i32 -> vector<24x128xf32>
    %cst_3 = arith.constant 2.000000e+00 : f32
    %10 = vector.broadcast %cst_3 : f32 to vector<24x128xf32>
    %11 = arith.mulf %10, %4 : vector<24x128xf32>
    %12 = arith.addf %9, %11 : vector<24x128xf32>
    %c23_i32 = arith.constant 23 : i32
    %13 = tpu.dynamic_rotate %4 by %c23_i32 dim 0 : vector<24x128xf32>, i32 -> vector<24x128xf32>
    %14 = arith.addf %12, %13 : vector<24x128xf32>
    %c1_i32_4 = arith.constant 1 : i32
    %15 = tpu.dynamic_rotate %8 by %c1_i32_4 dim 0 : vector<24x128xf32>, i32 -> vector<24x128xf32>
    %c23_i32_5 = arith.constant 23 : i32
    %16 = tpu.dynamic_rotate %8 by %c23_i32_5 dim 0 : vector<24x128xf32>, i32 -> vector<24x128xf32>
    %17 = arith.subf %15, %16 : vector<24x128xf32>
    %18 = arith.mulf %14, %14 : vector<24x128xf32>
    %19 = arith.mulf %17, %17 : vector<24x128xf32>
    %20 = arith.addf %18, %19 : vector<24x128xf32>
    %21 = arith.maximumf %2, %1 : vector<24x128xf32>
    %22 = arith.maximumf %21, %3 : vector<24x128xf32>
    %c1_i32_6 = arith.constant 1 : i32
    %23 = tpu.dynamic_rotate %22 by %c1_i32_6 dim 0 : vector<24x128xf32>, i32 -> vector<24x128xf32>
    %24 = arith.maximumf %23, %22 : vector<24x128xf32>
    %c23_i32_7 = arith.constant 23 : i32
    %25 = tpu.dynamic_rotate %22 by %c23_i32_7 dim 0 : vector<24x128xf32>, i32 -> vector<24x128xf32>
    %26 = arith.maximumf %24, %25 : vector<24x128xf32>
    %c1_i32_8 = arith.constant 1 : i32
    %27 = tpu.dynamic_rotate %26 by %c1_i32_8 dim 1 : vector<24x128xf32>, i32 -> vector<24x128xf32>
    %c127_i32_9 = arith.constant 127 : i32
    %28 = tpu.dynamic_rotate %26 by %c127_i32_9 dim 1 : vector<24x128xf32>, i32 -> vector<24x128xf32>
    %29 = arith.maximumf %27, %26 : vector<24x128xf32>
    %30 = arith.maximumf %29, %28 : vector<24x128xf32>
    %c1_i32_10 = arith.constant 1 : i32
    %31 = tpu.dynamic_rotate %30 by %c1_i32_10 dim 0 : vector<24x128xf32>, i32 -> vector<24x128xf32>
    %32 = arith.maximumf %31, %30 : vector<24x128xf32>
    %c23_i32_11 = arith.constant 23 : i32
    %33 = tpu.dynamic_rotate %30 by %c23_i32_11 dim 0 : vector<24x128xf32>, i32 -> vector<24x128xf32>
    %34 = arith.maximumf %32, %33 : vector<24x128xf32>
    %35 = vector.extract_strided_slice %1 {offsets = [0, 0], sizes = [16, 16], strides = [1, 1]} : vector<24x128xf32> to vector<16x16xf32>
    %36 = vector.extract_strided_slice %26 {offsets = [0, 0], sizes = [16, 16], strides = [1, 1]} : vector<24x128xf32> to vector<16x16xf32>
    %37 = vector.extract_strided_slice %34 {offsets = [0, 0], sizes = [16, 16], strides = [1, 1]} : vector<24x128xf32> to vector<16x16xf32>
    %c0_12 = arith.constant 0 : index
    %c0_13 = arith.constant 0 : index
    %38 = memref.load %arg6[%c0_12, %c0_13] : memref<1x1xf32, #tpu.memory_space<smem>>
    %39 = vector.extract_strided_slice %20 {offsets = [0, 0], sizes = [16, 16], strides = [1, 1]} : vector<24x128xf32> to vector<16x16xf32>
    %40 = vector.broadcast %38 : f32 to vector<16x16xf32>
    %41 = arith.cmpf ogt, %39, %40 : vector<16x16xf32>
    %cst_14 = arith.constant 1.000000e+00 : f32
    %cst_15 = arith.constant 0.000000e+00 : f32
    %42 = vector.broadcast %cst_14 : f32 to vector<16x16xf32>
    %43 = vector.broadcast %cst_15 : f32 to vector<16x16xf32>
    %44 = arith.select %41, %42, %43 : vector<16x16xi1>, vector<16x16xf32>
    %cst_16 = arith.constant 2.000000e+00 : f32
    %45 = vector.broadcast %cst_16 : f32 to vector<16x16xf32>
    %46 = arith.mulf %35, %45 : vector<16x16xf32>
    %47 = arith.subf %46, %44 : vector<16x16xf32>
    %cst_17 = arith.constant 1.000000e+00 : f32
    %48 = vector.broadcast %cst_17 : f32 to vector<16x16xf32>
    %49 = arith.cmpf oeq, %47, %48 : vector<16x16xf32>
    %cst_18 = arith.constant 1.000000e+00 : f32
    %cst_19 = arith.constant 0.000000e+00 : f32
    %50 = vector.broadcast %cst_18 : f32 to vector<16x16xf32>
    %51 = vector.broadcast %cst_19 : f32 to vector<16x16xf32>
    %52 = arith.select %49, %50, %51 : vector<16x16xi1>, vector<16x16xf32>
    %c0_20 = arith.constant 0 : index
    %c0_21 = arith.constant 0 : index
    %c0_22 = arith.constant 0 : index
    %53 = vector.load %arg1[%c0_20, %c0_21, %c0_22] : memref<1x16x16xf32, #tpu.memory_space<vmem>>, vector<1x16x16xf32>
    %54 = vector.shape_cast %53 : vector<1x16x16xf32> to vector<16x16xf32>
    %cst_23 = arith.constant 5.000000e-01 : f32
    %55 = vector.broadcast %cst_23 : f32 to vector<16x16xf32>
    %56 = arith.cmpf ogt, %35, %55 : vector<16x16xf32>
    %cst_24 = arith.constant 1.000000e+00 : f32
    %57 = vector.broadcast %cst_24 : f32 to vector<16x16xf32>
    %58 = arith.subf %57, %54 : vector<16x16xf32>
    %59 = arith.select %56, %54, %58 : vector<16x16xi1>, vector<16x16xf32>
    %60 = math.log %59 : vector<16x16xf32>
    %cst_25 = arith.constant -1.000000e+02 : f32
    %61 = vector.broadcast %cst_25 : f32 to vector<16x16xf32>
    %62 = arith.maximumf %60, %61 : vector<16x16xf32>
    %cst_26 = arith.constant 0.000000e+00 : f32
    %63 = vector.broadcast %cst_26 : f32 to vector<16x16xf32>
    %64 = arith.subf %63, %62 : vector<16x16xf32>
    %65 = vector.shape_cast %64 : vector<16x16xf32> to vector<1x16x16xf32>
    %cst_27 = arith.constant dense<0.000000e+00> : vector<1xf32>
    %66 = vector.multi_reduction <add>, %65, %cst_27 [1, 2] : vector<1x16x16xf32> to vector<1xf32>
    %67 = vector.shape_cast %66 : vector<1xf32> to vector<1x1x1xf32>
    %68 = vector.extract %67[0, 0, 0] : f32 from vector<1x1x1xf32>
    %c0_28 = arith.constant 0 : index
    %c0_29 = arith.constant 0 : index
    %c0_30 = arith.constant 0 : index
    %69 = vector.load %arg2[%c0_28, %c0_29, %c0_30] : memref<1x16x16xf32, #tpu.memory_space<vmem>>, vector<1x16x16xf32>
    %70 = vector.shape_cast %69 : vector<1x16x16xf32> to vector<16x16xf32>
    %cst_31 = arith.constant 5.000000e-01 : f32
    %71 = vector.broadcast %cst_31 : f32 to vector<16x16xf32>
    %72 = arith.cmpf ogt, %36, %71 : vector<16x16xf32>
    %cst_32 = arith.constant 1.000000e+00 : f32
    %73 = vector.broadcast %cst_32 : f32 to vector<16x16xf32>
    %74 = arith.subf %73, %70 : vector<16x16xf32>
    %75 = arith.select %72, %70, %74 : vector<16x16xi1>, vector<16x16xf32>
    %76 = math.log %75 : vector<16x16xf32>
    %cst_33 = arith.constant -1.000000e+02 : f32
    %77 = vector.broadcast %cst_33 : f32 to vector<16x16xf32>
    %78 = arith.maximumf %76, %77 : vector<16x16xf32>
    %cst_34 = arith.constant 0.000000e+00 : f32
    %79 = vector.broadcast %cst_34 : f32 to vector<16x16xf32>
    %80 = arith.subf %79, %78 : vector<16x16xf32>
    %81 = vector.shape_cast %80 : vector<16x16xf32> to vector<1x16x16xf32>
    %cst_35 = arith.constant dense<0.000000e+00> : vector<1xf32>
    %82 = vector.multi_reduction <add>, %81, %cst_35 [1, 2] : vector<1x16x16xf32> to vector<1xf32>
    %83 = vector.shape_cast %82 : vector<1xf32> to vector<1x1x1xf32>
    %84 = vector.extract %83[0, 0, 0] : f32 from vector<1x1x1xf32>
    %c0_36 = arith.constant 0 : index
    %c0_37 = arith.constant 0 : index
    %c0_38 = arith.constant 0 : index
    %85 = vector.load %arg3[%c0_36, %c0_37, %c0_38] : memref<1x16x16xf32, #tpu.memory_space<vmem>>, vector<1x16x16xf32>
    %86 = vector.shape_cast %85 : vector<1x16x16xf32> to vector<16x16xf32>
    %cst_39 = arith.constant 5.000000e-01 : f32
    %87 = vector.broadcast %cst_39 : f32 to vector<16x16xf32>
    %88 = arith.cmpf ogt, %37, %87 : vector<16x16xf32>
    %cst_40 = arith.constant 1.000000e+00 : f32
    %89 = vector.broadcast %cst_40 : f32 to vector<16x16xf32>
    %90 = arith.subf %89, %86 : vector<16x16xf32>
    %91 = arith.select %88, %86, %90 : vector<16x16xi1>, vector<16x16xf32>
    %92 = math.log %91 : vector<16x16xf32>
    %cst_41 = arith.constant -1.000000e+02 : f32
    %93 = vector.broadcast %cst_41 : f32 to vector<16x16xf32>
    %94 = arith.maximumf %92, %93 : vector<16x16xf32>
    %cst_42 = arith.constant 0.000000e+00 : f32
    %95 = vector.broadcast %cst_42 : f32 to vector<16x16xf32>
    %96 = arith.subf %95, %94 : vector<16x16xf32>
    %97 = vector.shape_cast %96 : vector<16x16xf32> to vector<1x16x16xf32>
    %cst_43 = arith.constant dense<0.000000e+00> : vector<1xf32>
    %98 = vector.multi_reduction <add>, %97, %cst_43 [1, 2] : vector<1x16x16xf32> to vector<1xf32>
    %99 = vector.shape_cast %98 : vector<1xf32> to vector<1x1x1xf32>
    %100 = vector.extract %99[0, 0, 0] : f32 from vector<1x1x1xf32>
    %c0_44 = arith.constant 0 : index
    %c0_45 = arith.constant 0 : index
    %c0_46 = arith.constant 0 : index
    %101 = vector.load %arg4[%c0_44, %c0_45, %c0_46] : memref<1x16x16xf32, #tpu.memory_space<vmem>>, vector<1x16x16xf32>
    %102 = vector.shape_cast %101 : vector<1x16x16xf32> to vector<16x16xf32>
    %cst_47 = arith.constant 5.000000e-01 : f32
    %103 = vector.broadcast %cst_47 : f32 to vector<16x16xf32>
    %104 = arith.cmpf ogt, %52, %103 : vector<16x16xf32>
    %cst_48 = arith.constant 1.000000e+00 : f32
    %105 = vector.broadcast %cst_48 : f32 to vector<16x16xf32>
    %106 = arith.subf %105, %102 : vector<16x16xf32>
    %107 = arith.select %104, %102, %106 : vector<16x16xi1>, vector<16x16xf32>
    %108 = math.log %107 : vector<16x16xf32>
    %cst_49 = arith.constant -1.000000e+02 : f32
    %109 = vector.broadcast %cst_49 : f32 to vector<16x16xf32>
    %110 = arith.maximumf %108, %109 : vector<16x16xf32>
    %cst_50 = arith.constant 0.000000e+00 : f32
    %111 = vector.broadcast %cst_50 : f32 to vector<16x16xf32>
    %112 = arith.subf %111, %110 : vector<16x16xf32>
    %113 = vector.shape_cast %112 : vector<16x16xf32> to vector<1x16x16xf32>
    %cst_51 = arith.constant dense<0.000000e+00> : vector<1xf32>
    %114 = vector.multi_reduction <add>, %113, %cst_51 [1, 2] : vector<1x16x16xf32> to vector<1xf32>
    %115 = vector.shape_cast %114 : vector<1xf32> to vector<1x1x1xf32>
    %116 = vector.extract %115[0, 0, 0] : f32 from vector<1x1x1xf32>
    %117 = tpu.iota {dimensions = array<i32: 1>} : vector<8x128xi32>
    %c0_i32 = arith.constant 0 : i32
    %118 = vector.broadcast %c0_i32 : i32 to vector<8x128xi32>
    %119 = arith.cmpi eq, %117, %118 : vector<8x128xi32>
    %cst_52 = arith.constant 0.000000e+00 : f32
    %120 = vector.broadcast %68 : f32 to vector<8x128xf32>
    %121 = vector.broadcast %cst_52 : f32 to vector<8x128xf32>
    %122 = arith.select %119, %120, %121 : vector<8x128xi1>, vector<8x128xf32>
    %c1_i32_53 = arith.constant 1 : i32
    %123 = vector.broadcast %c1_i32_53 : i32 to vector<8x128xi32>
    %124 = arith.cmpi eq, %117, %123 : vector<8x128xi32>
    %cst_54 = arith.constant 0.000000e+00 : f32
    %125 = vector.broadcast %84 : f32 to vector<8x128xf32>
    %126 = vector.broadcast %cst_54 : f32 to vector<8x128xf32>
    %127 = arith.select %124, %125, %126 : vector<8x128xi1>, vector<8x128xf32>
    %128 = arith.addf %122, %127 : vector<8x128xf32>
    %c2_i32 = arith.constant 2 : i32
    %129 = vector.broadcast %c2_i32 : i32 to vector<8x128xi32>
    %130 = arith.cmpi eq, %117, %129 : vector<8x128xi32>
    %cst_55 = arith.constant 0.000000e+00 : f32
    %131 = vector.broadcast %100 : f32 to vector<8x128xf32>
    %132 = vector.broadcast %cst_55 : f32 to vector<8x128xf32>
    %133 = arith.select %130, %131, %132 : vector<8x128xi1>, vector<8x128xf32>
    %134 = arith.addf %128, %133 : vector<8x128xf32>
    %c3_i32 = arith.constant 3 : i32
    %135 = vector.broadcast %c3_i32 : i32 to vector<8x128xi32>
    %136 = arith.cmpi eq, %117, %135 : vector<8x128xi32>
    %cst_56 = arith.constant 0.000000e+00 : f32
    %137 = vector.broadcast %116 : f32 to vector<8x128xf32>
    %138 = vector.broadcast %cst_56 : f32 to vector<8x128xf32>
    %139 = arith.select %136, %137, %138 : vector<8x128xi1>, vector<8x128xf32>
    %140 = arith.addf %134, %139 : vector<8x128xf32>
    %c0_57 = arith.constant 0 : index
    %c0_58 = arith.constant 0 : index
    %c0_59 = arith.constant 0 : index
    %141 = vector.load %arg7[%c0_57, %c0_58, %c0_59] : memref<1x8x128xf32, #tpu.memory_space<vmem>>, vector<1x8x128xf32>
    %142 = vector.shape_cast %141 : vector<1x8x128xf32> to vector<8x128xf32>
    %143 = vector.shape_cast %140 : vector<8x128xf32> to vector<1x8x128xf32>
    tpu.vector_store %arg7[%c0_57, %c0_58, %c0_59], %143 {strides = array<i32>} : memref<1x8x128xf32, #tpu.memory_space<vmem>>, vector<1x8x128xf32>,
    return
  }
  func.func @transform_0(%arg0: i32) -> (i32, i32, i32) {
    %c0_i32 = arith.constant 0 : i32
    %c0_i32_0 = arith.constant 0 : i32
    %c0_i32_1 = arith.constant 0 : i32
    return %arg0, %c0_i32, %c0_i32_0 : i32, i32, i32
  }
  func.func @transform_1(%arg0: i32) -> (i32, i32, i32) {
    %c0_i32 = arith.constant 0 : i32
    %c0_i32_0 = arith.constant 0 : i32
    %c0_i32_1 = arith.constant 0 : i32
    return %arg0, %c0_i32, %c0_i32_0 : i32, i32, i32
  }
  func.func @transform_2(%arg0: i32) -> (i32, i32, i32) {
    %c0_i32 = arith.constant 0 : i32
    %c0_i32_0 = arith.constant 0 : i32
    %c0_i32_1 = arith.constant 0 : i32
    return %arg0, %c0_i32, %c0_i32_0 : i32, i32, i32
  }
  func.func @transform_3(%arg0: i32) -> (i32, i32, i32) {
    %c0_i32 = arith.constant 0 : i32
    %c0_i32_0 = arith.constant 0 : i32
    %c0_i32_1 = arith.constant 0 : i32
    return %arg0, %c0_i32, %c0_i32_0 : i32, i32, i32
  }
  func.func @transform_4(%arg0: i32) -> (i32, i32, i32) {
    %c0_i32 = arith.constant 0 : i32
    %c0_i32_0 = arith.constant 0 : i32
    %c0_i32_1 = arith.constant 0 : i32
    return %arg0, %c0_i32, %c0_i32_0 : i32, i32, i32
  }
  func.func @transform_5(%arg0: i32) -> (i32, i32) {
    %c0_i32 = arith.constant 0 : i32
    %c0_i32_0 = arith.constant 0 : i32
    %c0_i32_1 = arith.constant 0 : i32
    return %c0_i32, %c0_i32_0 : i32, i32
  }
  func.func @transform_6(%arg0: i32) -> (i32, i32, i32) {
    %c0_i32 = arith.constant 0 : i32
    %c0_i32_0 = arith.constant 0 : i32
    %c0_i32_1 = arith.constant 0 : i32
    return %arg0, %c0_i32, %c0_i32_0 : i32, i32, i32
  }
}

module attributes {stable_mosaic.version = 11 : i64} {
  func.func @_g2min_kernel(%arg0: i32, %arg1: memref<1x24x128xf32, #tpu.memory_space<vmem>>, %arg2: memref<1x8x128xf32, #tpu.memory_space<vmem>>) attributes {dimension_semantics = [#tpu.dimension_semantics<parallel>], iteration_bounds = array<i64: 2>, scalar_prefetch = 0 : i64, scratch_operands = 0 : i64, tpu.core_type = #tpu.core_type<tc>, window_params = [{transform_indices = @transform_0, window_bounds = array<i64: 1, 24, 128>}, {transform_indices = @transform_1, window_bounds = array<i64: 1, 8, 128>}]} {
    %c0 = arith.constant 0 : index
    %c0_0 = arith.constant 0 : index
    %c0_1 = arith.constant 0 : index
    %0 = vector.load %arg1[%c0, %c0_0, %c0_1] : memref<1x24x128xf32, #tpu.memory_space<vmem>>, vector<1x24x128xf32>
    %1 = vector.shape_cast %0 : vector<1x24x128xf32> to vector<24x128xf32>
    %c1_i32 = arith.constant 1 : i32
    %2 = tpu.dynamic_rotate %1 by %c1_i32 dim 1 : vector<24x128xf32>, i32 -> vector<24x128xf32>
    %c127_i32 = arith.constant 127 : i32
    %3 = tpu.dynamic_rotate %1 by %c127_i32 dim 1 : vector<24x128xf32>, i32 -> vector<24x128xf32>
    %4 = arith.subf %2, %3 : vector<24x128xf32>
    %cst = arith.constant 2.000000e+00 : f32
    %5 = vector.broadcast %cst : f32 to vector<24x128xf32>
    %6 = arith.mulf %5, %1 : vector<24x128xf32>
    %7 = arith.addf %2, %6 : vector<24x128xf32>
    %8 = arith.addf %7, %3 : vector<24x128xf32>
    %c1_i32_2 = arith.constant 1 : i32
    %9 = tpu.dynamic_rotate %4 by %c1_i32_2 dim 0 : vector<24x128xf32>, i32 -> vector<24x128xf32>
    %cst_3 = arith.constant 2.000000e+00 : f32
    %10 = vector.broadcast %cst_3 : f32 to vector<24x128xf32>
    %11 = arith.mulf %10, %4 : vector<24x128xf32>
    %12 = arith.addf %9, %11 : vector<24x128xf32>
    %c23_i32 = arith.constant 23 : i32
    %13 = tpu.dynamic_rotate %4 by %c23_i32 dim 0 : vector<24x128xf32>, i32 -> vector<24x128xf32>
    %14 = arith.addf %12, %13 : vector<24x128xf32>
    %c1_i32_4 = arith.constant 1 : i32
    %15 = tpu.dynamic_rotate %8 by %c1_i32_4 dim 0 : vector<24x128xf32>, i32 -> vector<24x128xf32>
    %c23_i32_5 = arith.constant 23 : i32
    %16 = tpu.dynamic_rotate %8 by %c23_i32_5 dim 0 : vector<24x128xf32>, i32 -> vector<24x128xf32>
    %17 = arith.subf %15, %16 : vector<24x128xf32>
    %18 = arith.mulf %14, %14 : vector<24x128xf32>
    %19 = arith.mulf %17, %17 : vector<24x128xf32>
    %20 = arith.addf %18, %19 : vector<24x128xf32>
    %21 = vector.extract_strided_slice %20 {offsets = [0, 0], sizes = [16, 16], strides = [1, 1]} : vector<24x128xf32> to vector<16x16xf32>
    %22 = vector.shape_cast %21 : vector<16x16xf32> to vector<1x16x16xf32>
    %cst_6 = arith.constant dense<0x7F800000> : vector<1xf32>
    %23 = vector.multi_reduction <minimumf>, %22, %cst_6 [1, 2] : vector<1x16x16xf32> to vector<1xf32>
    %24 = vector.shape_cast %23 : vector<1xf32> to vector<1x1x1xf32>
    %25 = vector.extract %24[0, 0, 0] : f32 from vector<1x1x1xf32>
    %26 = vector.broadcast %25 : f32 to vector<8x128xf32>
    %c0_7 = arith.constant 0 : index
    %c0_8 = arith.constant 0 : index
    %c0_9 = arith.constant 0 : index
    %27 = vector.load %arg2[%c0_7, %c0_8, %c0_9] : memref<1x8x128xf32, #tpu.memory_space<vmem>>, vector<1x8x128xf32>
    %28 = vector.shape_cast %27 : vector<1x8x128xf32> to vector<8x128xf32>
    %29 = vector.shape_cast %26 : vector<8x128xf32> to vector<1x8x128xf32>
    tpu.vector_store %arg2[%c0_7, %c0_8, %c0_9], %29 {strides = array<i32>} : memref<1x8x128xf32, #tpu.memory_space<vmem>>, vector<1x8x128xf32>,
    return
  }
  func.func @transform_0(%arg0: i32) -> (i32, i32, i32) {
    %c0_i32 = arith.constant 0 : i32
    %c0_i32_0 = arith.constant 0 : i32
    %c0_i32_1 = arith.constant 0 : i32
    return %arg0, %c0_i32, %c0_i32_0 : i32, i32, i32
  }
  func.func @transform_1(%arg0: i32) -> (i32, i32, i32) {
    %c0_i32 = arith.constant 0 : i32
    %c0_i32_0 = arith.constant 0 : i32
    %c0_i32_1 = arith.constant 0 : i32
    return %arg0, %c0_i32, %c0_i32_0 : i32, i32, i32
  }
}

</mosaic_0001>

<llo_original>
// kernel: uunet_loss.2
$region0: #{uunet_loss.2}
  #allocation0 [shape = 'u32[]', space=smem, size = 0x4, offset = 0x4, fixed_abs, tag = 'smem constant byte address 0x4 - core index']
  #allocation1 [shape = 'u32[144,128]{1,0:T(1,128)}', space=vmem, size = 0x12000, scoped, tag = 'internal scratch']
  %s0 = inlined_call_operand.vmem [shape: f32[2,24,128], index: 0, kind: input, shape index: {}]
  %s1 = inlined_call_operand.vmem [shape: f32[2,8,128], index: 1, kind: output, shape index: {}]
  %s2 = sld [smem:[#allocation0]]
  $region37: #{uunet_loss.2} parent=0
    _
  %s4 = ssub.s32 1, %s2
  %s5 = scalar_select 0, %s4, %s2
  loop: start=0, step=1, limit=4
  $region2: #{uunet_loss.2} parent=0 // loop_pre_header
    _
  $region3: #{uunet_loss.2} parent=0 // loop_header
    %s7 = sphi 0, %s11
    %p8 = scmp.ge.s32.totalorder %s7, 4
    %s17 = sphi 0, %s19
    %s20 = sphi 0, %s17
    %s21 = sphi 0, %s20
    %s37 = sphi 0, %s21
    %s43 = sphi 0, %s45
    %s46 = sphi 0, %s43
    %s47 = sphi 0, %s46
    %s63 = sphi 0, %s47
  $region4: #{uunet_loss.2} parent=0 // loop_header_branch
    %10 = sbr.rel (%p8) target = $region8
  $region5: #{uunet_loss.2} parent=0 // loop_body
    %s12 = ssub.s32 %s7, 1
    %s13 = ssub.s32 %s7, 2
    %s14 = sadd.s32 %s7, 1
    %s15 = ssub.s32 %s7, %s14
    %p16 = scmp.eq.s32.totalorder %s15, 0
    %s18 = sadd.s32 %s17, 1
    %s19 = scalar_select %p16, %s17, %s18
    %p22 = pneg %p16
    %p23 = scmp.eq.s32.totalorder %s7, 1
    %p24 = por %p22, %p23
    %p25 = scmp.ne.s32.totalorder %s17, %s20
    %p26 = scmp.eq.s32.totalorder %s7, 0
    %p27 = por %p25, %p26
    %p28 = scmp.ne.s32.totalorder %s17, %s20
    %p29 = scmp.eq.s32.totalorder %s12, 1
    %p30 = por %p28, %p29
    %p31 = scmp.ne.s32.totalorder %s20, %s21
    %p32 = scmp.eq.s32.totalorder %s12, 0
    %p33 = por %p31, %p32
    %p34 = scmp.ne.s32.totalorder %s20, %s21
    %p35 = scmp.eq.s32.totalorder %s13, 1
    %p36 = por %p34, %p35
    %p38 = scmp.ne.s32.totalorder %s21, %s37
    %p39 = scmp.eq.s32.totalorder %s13, 0
    %p40 = por %p38, %p39
    %s41 = ssub.s32 %s7, %s14
    %p42 = scmp.eq.s32.totalorder %s41, 0
    %s44 = sadd.s32 %s43, 1
    %s45 = scalar_select %p42, %s43, %s44
    %p48 = pneg %p42
    %p49 = scmp.eq.s32.totalorder %s7, 1
    %p50 = por %p48, %p49
    %p51 = scmp.ne.s32.totalorder %s43, %s46
    %p52 = scmp.eq.s32.totalorder %s7, 0
    %p53 = por %p51, %p52
    %p54 = scmp.ne.s32.totalorder %s43, %s46
    %p55 = scmp.eq.s32.totalorder %s12, 1
    %p56 = por %p54, %p55
    %p57 = scmp.ne.s32.totalorder %s46, %s47
    %p58 = scmp.eq.s32.totalorder %s12, 0
    %p59 = por %p57, %p58
    %p60 = scmp.ne.s32.totalorder %s46, %s47
    %p61 = scmp.eq.s32.totalorder %s13, 1
    %p62 = por %p60, %p61
    %p64 = scmp.ne.s32.totalorder %s47, %s63
    %p65 = scmp.eq.s32.totalorder %s13, 0
    %p66 = por %p64, %p65
    %p67 = scmp.le.s32.totalorder 1, %s7
    %p68 = scmp.lt.s32.totalorder %s7, 3
    %p69 = pnand %p67, %p68
    %p70 = pneg %p69
    // Predicated region
    $region9: #{uunet_loss.2} parent=5 // pred_check
      _
    $region10: #{uunet_loss.2} parent=5 // pred_check_branch
      %72 = sbr.rel (%p69) target = $region12
    $region11: #{uunet_loss.2} parent=5 // pred_region
      %s73 = ssub.s32 %s7, 1
    $region12: #{uunet_loss.2} parent=5 // pred_fallthru
      _
    %p74 = scmp.lt.s32.totalorder %s7, 2
    // Predicated region
    $region13: #{uunet_loss.2} parent=5 // pred_check
      %p75 = pneg %p74
    $region14: #{uunet_loss.2} parent=5 // pred_check_branch
      %77 = sbr.rel (%p75) target = $region16
    $region15: #{uunet_loss.2} parent=5 // pred_region
      // Predicated region
      $region17: #{uunet_loss.2} parent=15 // pred_check
        %p78 = pneg %p27
      $region18: #{uunet_loss.2} parent=15 // pred_check_branch
        %80 = sbr.rel (%p78) target = $region20
      $region19: #{uunet_loss.2} parent=15 // pred_region
        %p81 = scmp.lt.s32.totalorder %s7, 1
        %s82 = scalar_select %p81, %s7, 1
        %s83 = smul.addr %s82, 3
        %s84 = smul.addr %s83, 8
        %s85 = scalar_lea.vmem %s0, %s84
      $region20: #{uunet_loss.2} parent=15 // pred_fallthru
        _
    $region16: #{uunet_loss.2} parent=5 // pred_fallthru
      _
    %p86 = scmp.le.s32.totalorder 1, %s7
    %p87 = scmp.lt.s32.totalorder %s7, 3
    %p88 = pnand %p86, %p87
    %p89 = pneg %p88
    // Predicated region
    $region21: #{uunet_loss.2} parent=5 // pred_check
      _
    $region22: #{uunet_loss.2} parent=5 // pred_check_branch
      %91 = sbr.rel (%p88) target = $region24
    $region23: #{uunet_loss.2} parent=5 // pred_region
      %s92 = ssub.s32 %s7, 1
      %p93 = scmp.lt.s32.totalorder %s12, 1
      %s94 = scalar_select %p93, %s12, 1
      %s95 = smul.addr %s94, 3
      %s96 = smul.addr %s95, 8
      %s97 = scalar_lea.vmem %s0, %s96
      %p98 = pneg %p33
      %p99 = pneg %p30
      %p100 = pneg %p59
      %p101 = pneg %p56
      %p102 = scmp.lt.s32.totalorder %s12, 1
      %s103 = scalar_select %p102, %s12, 1
      %s104 = smul.addr %s103, 8
      %s105 = scalar_lea.vmem %s1, %s104
      %p106 = scmp.lt.s32.totalorder %s12, 1
      %s107 = scalar_select %p106, %s12, 1
      %s108 = smul.addr %s107, 3
      %s109 = smul.addr %s108, 8
      %s110 = scalar_lea.vmem %s0, %s109
      %p111 = scmp.lt.s32.totalorder %s12, 1
      %s112 = scalar_select %p111, %s12, 1
      %s113 = smul.addr %s112, 8
      %s114 = scalar_lea.vmem %s1, %s113
      %v115 = vld [vmem:[%s110] sm:$0xff]
      %v116 = vld [vmem:[%s110 + $0x8] sm:$0xff]
      %v117 = vld [vmem:[%s110 + $0x10] sm:$0xff]
      %118 = vrot.lane.b32.xlu0 %v115, 1
      %v119 = vpop.permute.xlu0 %118
      %120 = vrot.lane.b32.xlu0 %v116, 1
      %v121 = vpop.permute.xlu0 %120
      %122 = vrot.lane.b32.xlu0 %v117, 1
      %v123 = vpop.permute.xlu0 %122
      %124 = vrot.lane.b32.xlu0 %v115, 127
      %v125 = vpop.permute.xlu0 %124
      %126 = vrot.lane.b32.xlu0 %v116, 127
      %v127 = vpop.permute.xlu0 %126
      %128 = vrot.lane.b32.xlu0 %v117, 127
      %v129 = vpop.permute.xlu0 %128
      %v130 = vsub.f32 %v119, %v125
      %v131 = vsub.f32 %v121, %v127
      %v132 = vsub.f32 %v123, %v129
      %v133 = vmul.f32 %v115, 2.0
      %v134 = vmul.f32 %v116, 2.0
      %v135 = vmul.f32 %v117, 2.0
      %v136 = vadd.f32 %v119, %v133
      %v137 = vadd.f32 %v121, %v134
      %v138 = vadd.f32 %v123, %v135
      %v139 = vadd.f32 %v136, %v125
      %v140 = vadd.f32 %v137, %v127
      %v141 = vadd.f32 %v138, %v129
      %v142 = vrot.slane %v130, 7
      %v143 = vrot.slane %v131, 7
      %v144 = vrot.slane %v132, 7
      %v145 = vlaneseq
      %v146 = vshrl.u32 %v145, 7
      %vm147 = vcmp.lt.s32.totalorder %v146, 1
      %v148 = vsel %vm147, %v142, %v143
      %v149 = vsel %vm147, %v144, %v142
      %v150 = vmul.f32 %v130, 2.0
      %v151 = vmul.f32 %v131, 2.0
      %v152 = vadd.f32 %v149, %v150
      %v153 = vadd.f32 %v148, %v151
      %v154 = vrot.slane %v130, 1
      %v155 = vrot.slane %v131, 1
      %v156 = vrot.slane %v132, 1
      %vm157 = vcmp.lt.s32.totalorder %v146, 7
      %v158 = vsel %vm157, %v155, %v156
      %v159 = vsel %vm157, %v154, %v155
      %v160 = vadd.f32 %v152, %v159
      %v161 = vadd.f32 %v153, %v158
      %v162 = vrot.slane %v139, 7
      %v163 = vrot.slane %v140, 7
      %v164 = vrot.slane %v141, 7
      %v165 = vsel %vm147, %v162, %v163
      %v166 = vsel %vm147, %v164, %v162
      %v167 = vrot.slane %v139, 1
      %v168 = vrot.slane %v140, 1
      %v169 = vrot.slane %v141, 1
      %v170 = vsel %vm157, %v168, %v169
      %v171 = vsel %vm157, %v167, %v168
      %v172 = vsub.f32 %v166, %v171
      %v173 = vsub.f32 %v165, %v170
      %v174 = vmul.f32 %v160, %v160
      %v175 = vmul.f32 %v161, %v161
      %v176 = vmul.f32 %v172, %v172
      %v177 = vmul.f32 %v173, %v173
      %v178 = vadd.f32 %v174, %v176
      %v179 = vadd.f32 %v175, %v177
      %vm180 = vcmask 130048
      %v181 = vsel %vm180, %v178, inf
      %v182 = vsel %vm180, %v179, inf
      %v183 = vmin.f32 %v181, %v182
      %184 = vmin.xlane.f32.xlu0 %v183
      %v185 = vpop.xlane.xlu0 %184
      %v186 = vrot.slane %v185, 4
      %v187 = vmin.f32 %v185, %v186
      %v188 = vrot.slane %v187, 2
      %v189 = vmin.f32 %v187, %v188
      %v190 = vrot.slane %v189, 1
      %v191 = vmin.f32 %v189, %v190
      %s192 = vtos %v191
      %v193 = vstv %s192
      %194 = vst [vmem:[%s114] sm:$0xff] %v193
      %p195 = scmp.lt.s32.totalorder %s12, 1
      %s196 = scalar_select %p195, %s12, 1
      %s197 = smul.addr %s196, 8
      %s198 = scalar_lea.vmem %s1, %s197
      // Predicated region
      $region25: #{uunet_loss.2} parent=23 // pred_check
        %p199 = pneg %p56
      $region26: #{uunet_loss.2} parent=23 // pred_check_branch
        %201 = sbr.rel (%p199) target = $region28
      $region27: #{uunet_loss.2} parent=23 // pred_region
        _
      $region28: #{uunet_loss.2} parent=23 // pred_fallthru
        _
    $region24: #{uunet_loss.2} parent=5 // pred_fallthru
      _
    %p202 = scmp.le.s32.totalorder 2, %s7
    // Predicated region
    $region29: #{uunet_loss.2} parent=5 // pred_check
      %p203 = pneg %p202
    $region30: #{uunet_loss.2} parent=5 // pred_check_branch
      %205 = sbr.rel (%p203) target = $region32
    $region31: #{uunet_loss.2} parent=5 // pred_region
      %s206 = ssub.s32 %s7, 2
      // Predicated region
      $region33: #{uunet_loss.2} parent=31 // pred_check
        %p207 = pneg %p62
      $region34: #{uunet_loss.2} parent=31 // pred_check_branch
        %209 = sbr.rel (%p207) target = $region36
      $region35: #{uunet_loss.2} parent=31 // pred_region
        %p210 = scmp.lt.s32.totalorder %s13, 1
        %s211 = scalar_select %p210, %s13, 1
        %s212 = smul.addr %s211, 8
        %s213 = scalar_lea.vmem %s1, %s212
      $region36: #{uunet_loss.2} parent=31 // pred_fallthru
        _
    $region32: #{uunet_loss.2} parent=5 // pred_fallthru
      _
  $region6: #{uunet_loss.2} parent=0 // loop_footer
    %s11 = sadd.s32 1, %s7
  $region7: #{uunet_loss.2} parent=0 // loop_footer_branch
    %6 = sbr.rel target = $region3
  $region8: #{uunet_loss.2} parent=0 // loop_exit
    _

// kernel: uunet_loss.3
$region0: #{uunet_loss.3}
  #allocation0 [shape = 'u32[]', space=smem, size = 0x4, offset = 0x4, fixed_abs, tag = 'smem constant byte address 0x4 - core index']
  #allocation1 [shape = 'u32[144,128]{1,0:T(1,128)}', space=vmem, size = 0x12000, scoped, tag = 'internal scratch']
  #allocation2 [shape = 'f32[1,1]{1,0:T(1,128)S(6)}', space=smem, size = 0x200, scoped, tag = 'scoped memory for uunet_loss.3']
  %s0 = inlined_call_operand.vmem [shape: f32[2,16,16], index: 0, kind: input, shape index: {}]
  %s1 = inlined_call_operand.vmem [shape: f32[2,16,16], index: 1, kind: input, shape index: {}]
  %s2 = inlined_call_operand.vmem [shape: f32[2,16,16], index: 2, kind: input, shape index: {}]
  %s3 = inlined_call_operand.vmem [shape: f32[2,16,16], index: 3, kind: input, shape index: {}]
  %s4 = inlined_call_operand.vmem [shape: f32[2,24,128], index: 4, kind: input, shape index: {}]
  %s5 = inlined_call_operand.<no memory space> [shape: f32[1,1], index: 5, kind: input, shape index: {}]
  %s6 = inlined_call_operand.vmem [shape: f32[2,8,128], index: 6, kind: output, shape index: {}]
  %s7 = sld [smem:[#allocation0]]
  $region57: #{uunet_loss.3} parent=0
    _
  %s9 = ssub.s32 1, %s7
  %s10 = scalar_select 0, %s9, %s7
  %11 = sst [smem:[#allocation2]] %s5
  loop: start=0, step=1, limit=4
  $region2: #{uunet_loss.3} parent=0 // loop_pre_header
    _
  $region3: #{uunet_loss.3} parent=0 // loop_header
    %s13 = sphi 0, %s17
    %p14 = scmp.ge.s32.totalorder %s13, 4
    %s23 = sphi 0, %s25
    %s26 = sphi 0, %s23
    %s27 = sphi 0, %s26
    %s43 = sphi 0, %s27
    %s49 = sphi 0, %s51
    %s52 = sphi 0, %s49
    %s53 = sphi 0, %s52
    %s69 = sphi 0, %s53
    %s75 = sphi 0, %s77
    %s78 = sphi 0, %s75
    %s79 = sphi 0, %s78
    %s95 = sphi 0, %s79
    %s101 = sphi 0, %s103
    %s104 = sphi 0, %s101
    %s105 = sphi 0, %s104
    %s121 = sphi 0, %s105
    %s127 = sphi 0, %s129
    %s130 = sphi 0, %s127
    %s131 = sphi 0, %s130
    %s147 = sphi 0, %s131
    %s151 = sphi 0, %s151
    %s153 = sphi 0, %s151
    %s154 = sphi 0, %s153
    %s168 = sphi 0, %s154
    %s174 = sphi 0, %s176
    %s177 = sphi 0, %s174
    %s178 = sphi 0, %s177
    %s194 = sphi 0, %s178
  $region4: #{uunet_loss.3} parent=0 // loop_header_branch
    %16 = sbr.rel (%p14) target = $region8
  $region5: #{uunet_loss.3} parent=0 // loop_body
    %s18 = ssub.s32 %s13, 1
    %s19 = ssub.s32 %s13, 2
    %s20 = sadd.s32 %s13, 1
    %s21 = ssub.s32 %s13, %s20
    %p22 = scmp.eq.s32.totalorder %s21, 0
    %s24 = sadd.s32 %s23, 1
    %s25 = scalar_select %p22, %s23, %s24
    %p28 = pneg %p22
    %p29 = scmp.eq.s32.totalorder %s13, 1
    %p30 = por %p28, %p29
    %p31 = scmp.ne.s32.totalorder %s23, %s26
    %p32 = scmp.eq.s32.totalorder %s13, 0
    %p33 = por %p31, %p32
    %p34 = scmp.ne.s32.totalorder %s23, %s26
    %p35 = scmp.eq.s32.totalorder %s18, 1
    %p36 = por %p34, %p35
    %p37 = scmp.ne.s32.totalorder %s26, %s27
    %p38 = scmp.eq.s32.totalorder %s18, 0
    %p39 = por %p37, %p38
    %p40 = scmp.ne.s32.totalorder %s26, %s27
    %p41 = scmp.eq.s32.totalorder %s19, 1
    %p42 = por %p40, %p41
    %p44 = scmp.ne.s32.totalorder %s27, %s43
    %p45 = scmp.eq.s32.totalorder %s19, 0
    %p46 = por %p44, %p45
    %s47 = ssub.s32 %s13, %s20
    %p48 = scmp.eq.s32.totalorder %s47, 0
    %s50 = sadd.s32 %s49, 1
    %s51 = scalar_select %p48, %s49, %s50
    %p54 = pneg %p48
    %p55 = scmp.eq.s32.totalorder %s13, 1
    %p56 = por %p54, %p55
    %p57 = scmp.ne.s32.totalorder %s49, %s52
    %p58 = scmp.eq.s32.totalorder %s13, 0
    %p59 = por %p57, %p58
    %p60 = scmp.ne.s32.totalorder %s49, %s52
    %p61 = scmp.eq.s32.totalorder %s18, 1
    %p62 = por %p60, %p61
    %p63 = scmp.ne.s32.totalorder %s52, %s53
    %p64 = scmp.eq.s32.totalorder %s18, 0
    %p65 = por %p63, %p64
    %p66 = scmp.ne.s32.totalorder %s52, %s53
    %p67 = scmp.eq.s32.totalorder %s19, 1
    %p68 = por %p66, %p67
    %p70 = scmp.ne.s32.totalorder %s53, %s69
    %p71 = scmp.eq.s32.totalorder %s19, 0
    %p72 = por %p70, %p71
    %s73 = ssub.s32 %s13, %s20
    %p74 = scmp.eq.s32.totalorder %s73, 0
    %s76 = sadd.s32 %s75, 1
    %s77 = scalar_select %p74, %s75, %s76
    %p80 = pneg %p74
    %p81 = scmp.eq.s32.totalorder %s13, 1
    %p82 = por %p80, %p81
    %p83 = scmp.ne.s32.totalorder %s75, %s78
    %p84 = scmp.eq.s32.totalorder %s13, 0
    %p85 = por %p83, %p84
    %p86 = scmp.ne.s32.totalorder %s75, %s78
    %p87 = scmp.eq.s32.totalorder %s18, 1
    %p88 = por %p86, %p87
    %p89 = scmp.ne.s32.totalorder %s78, %s79
    %p90 = scmp.eq.s32.totalorder %s18, 0
    %p91 = por %p89, %p90
    %p92 = scmp.ne.s32.totalorder %s78, %s79
    %p93 = scmp.eq.s32.totalorder %s19, 1
    %p94 = por %p92, %p93
    %p96 = scmp.ne.s32.totalorder %s79, %s95
    %p97 = scmp.eq.s32.totalorder %s19, 0
    %p98 = por %p96, %p97
    %s99 = ssub.s32 %s13, %s20
    %p100 = scmp.eq.s32.totalorder %s99, 0
    %s102 = sadd.s32 %s101, 1
    %s103 = scalar_select %p100, %s101, %s102
    %p106 = pneg %p100
    %p107 = scmp.eq.s32.totalorder %s13, 1
    %p108 = por %p106, %p107
    %p109 = scmp.ne.s32.totalorder %s101, %s104
    %p110 = scmp.eq.s32.totalorder %s13, 0
    %p111 = por %p109, %p110
    %p112 = scmp.ne.s32.totalorder %s101, %s104
    %p113 = scmp.eq.s32.totalorder %s18, 1
    %p114 = por %p112, %p113
    %p115 = scmp.ne.s32.totalorder %s104, %s105
    %p116 = scmp.eq.s32.totalorder %s18, 0
    %p117 = por %p115, %p116
    %p118 = scmp.ne.s32.totalorder %s104, %s105
    %p119 = scmp.eq.s32.totalorder %s19, 1
    %p120 = por %p118, %p119
    %p122 = scmp.ne.s32.totalorder %s105, %s121
    %p123 = scmp.eq.s32.totalorder %s19, 0
    %p124 = por %p122, %p123
    %s125 = ssub.s32 %s13, %s20
    %p126 = scmp.eq.s32.totalorder %s125, 0
    %s128 = sadd.s32 %s127, 1
    %s129 = scalar_select %p126, %s127, %s128
    %p132 = pneg %p126
    %p133 = scmp.eq.s32.totalorder %s13, 1
    %p134 = por %p132, %p133
    %p135 = scmp.ne.s32.totalorder %s127, %s130
    %p136 = scmp.eq.s32.totalorder %s13, 0
    %p137 = por %p135, %p136
    %p138 = scmp.ne.s32.totalorder %s127, %s130
    %p139 = scmp.eq.s32.totalorder %s18, 1
    %p140 = por %p138, %p139
    %p141 = scmp.ne.s32.totalorder %s130, %s131
    %p142 = scmp.eq.s32.totalorder %s18, 0
    %p143 = por %p141, %p142
    %p144 = scmp.ne.s32.totalorder %s130, %s131
    %p145 = scmp.eq.s32.totalorder %s19, 1
    %p146 = por %p144, %p145
    %p148 = scmp.ne.s32.totalorder %s131, %s147
    %p149 = scmp.eq.s32.totalorder %s19, 0
    %p150 = por %p148, %p149
    %s152 = sadd.s32 %s151, 1
    %p155 = scmp.eq.s32.totalorder %s13, 1
    %p156 = scmp.ne.s32.totalorder %s151, %s153
    %p157 = scmp.eq.s32.totalorder %s13, 0
    %p158 = por %p156, %p157
    %p159 = scmp.ne.s32.totalorder %s151, %s153
    %p160 = scmp.eq.s32.totalorder %s18, 1
    %p161 = por %p159, %p160
    %p162 = scmp.ne.s32.totalorder %s153, %s154
    %p163 = scmp.eq.s32.totalorder %s18, 0
    %p164 = por %p162, %p163
    %p165 = scmp.ne.s32.totalorder %s153, %s154
    %p166 = scmp.eq.s32.totalorder %s19, 1
    %p167 = por %p165, %p166
    %p169 = scmp.ne.s32.totalorder %s154, %s168
    %p170 = scmp.eq.s32.totalorder %s19, 0
    %p171 = por %p169, %p170
    %s172 = ssub.s32 %s13, %s20
    %p173 = scmp.eq.s32.totalorder %s172, 0
    %s175 = sadd.s32 %s174, 1
    %s176 = scalar_select %p173, %s174, %s175
    %p179 = pneg %p173
    %p180 = scmp.eq.s32.totalorder %s13, 1
    %p181 = por %p179, %p180
    %p182 = scmp.ne.s32.totalorder %s174, %s177
    %p183 = scmp.eq.s32.totalorder %s13, 0
    %p184 = por %p182, %p183
    %p185 = scmp.ne.s32.totalorder %s174, %s177
    %p186 = scmp.eq.s32.totalorder %s18, 1
    %p187 = por %p185, %p186
    %p188 = scmp.ne.s32.totalorder %s177, %s178
    %p189 = scmp.eq.s32.totalorder %s18, 0
    %p190 = por %p188, %p189
    %p191 = scmp.ne.s32.totalorder %s177, %s178
    %p192 = scmp.eq.s32.totalorder %s19, 1
    %p193 = por %p191, %p192
    %p195 = scmp.ne.s32.totalorder %s178, %s194
    %p196 = scmp.eq.s32.totalorder %s19, 0
    %p197 = por %p195, %p196
    %p198 = scmp.le.s32.totalorder 1, %s13
    %p199 = scmp.lt.s32.totalorder %s13, 3
    %p200 = pnand %p198, %p199
    %p201 = pneg %p200
    // Predicated region
    $region9: #{uunet_loss.3} parent=5 // pred_check
      _
    $region10: #{uunet_loss.3} parent=5 // pred_check_branch
      %203 = sbr.rel (%p200) target = $region12
    $region11: #{uunet_loss.3} parent=5 // pred_region
      %s204 = ssub.s32 %s13, 1
      // Predicated region
      $region13: #{uunet_loss.3} parent=11 // pred_check
        %p205 = pneg %p164
      $region14: #{uunet_loss.3} parent=11 // pred_check_branch
        %207 = sbr.rel (%p205) target = $region16
      $region15: #{uunet_loss.3} parent=11 // pred_region
        _
      $region16: #{uunet_loss.3} parent=11 // pred_fallthru
        _
    $region12: #{uunet_loss.3} parent=5 // pred_fallthru
      _
    %p208 = scmp.lt.s32.totalorder %s13, 2
    // Predicated region
    $region17: #{uunet_loss.3} parent=5 // pred_check
      %p209 = pneg %p208
    $region18: #{uunet_loss.3} parent=5 // pred_check_branch
      %211 = sbr.rel (%p209) target = $region20
    $region19: #{uunet_loss.3} parent=5 // pred_region
      // Predicated region
      $region21: #{uunet_loss.3} parent=19 // pred_check
        %p212 = pneg %p33
      $region22: #{uunet_loss.3} parent=19 // pred_check_branch
        %214 = sbr.rel (%p212) target = $region24
      $region23: #{uunet_loss.3} parent=19 // pred_region
        %p215 = scmp.lt.s32.totalorder %s13, 1
        %s216 = scalar_select %p215, %s13, 1
        %s217 = smul.addr %s216, 2
        %s218 = smul.addr %s217, 8
        %s219 = scalar_lea.vmem %s0, %s218
      $region24: #{uunet_loss.3} parent=19 // pred_fallthru
        _
      // Predicated region
      $region25: #{uunet_loss.3} parent=19 // pred_check
        %p220 = pneg %p59
      $region26: #{uunet_loss.3} parent=19 // pred_check_branch
        %222 = sbr.rel (%p220) target = $region28
      $region27: #{uunet_loss.3} parent=19 // pred_region
        %p223 = scmp.lt.s32.totalorder %s13, 1
        %s224 = scalar_select %p223, %s13, 1
        %s225 = smul.addr %s224, 2
        %s226 = smul.addr %s225, 8
        %s227 = scalar_lea.vmem %s1, %s226
      $region28: #{uunet_loss.3} parent=19 // pred_fallthru
        _
      // Predicated region
      $region29: #{uunet_loss.3} parent=19 // pred_check
        %p228 = pneg %p85
      $region30: #{uunet_loss.3} parent=19 // pred_check_branch
        %230 = sbr.rel (%p228) target = $region32
      $region31: #{uunet_loss.3} parent=19 // pred_region
        %p231 = scmp.lt.s32.totalorder %s13, 1
        %s232 = scalar_select %p231, %s13, 1
        %s233 = smul.addr %s232, 2
        %s234 = smul.addr %s233, 8
        %s235 = scalar_lea.vmem %s2, %s234
      $region32: #{uunet_loss.3} parent=19 // pred_fallthru
        _
      // Predicated region
      $region33: #{uunet_loss.3} parent=19 // pred_check
        %p236 = pneg %p111
      $region34: #{uunet_loss.3} parent=19 // pred_check_branch
        %238 = sbr.rel (%p236) target = $region36
      $region35: #{uunet_loss.3} parent=19 // pred_region
        %p239 = scmp.lt.s32.totalorder %s13, 1
        %s240 = scalar_select %p239, %s13, 1
        %s241 = smul.addr %s240, 2
        %s242 = smul.addr %s241, 8
        %s243 = scalar_lea.vmem %s3, %s242
      $region36: #{uunet_loss.3} parent=19 // pred_fallthru
        _
      // Predicated region
      $region37: #{uunet_loss.3} parent=19 // pred_check
        %p244 = pneg %p137
      $region38: #{uunet_loss.3} parent=19 // pred_check_branch
        %246 = sbr.rel (%p244) target = $region40
      $region39: #{uunet_loss.3} parent=19 // pred_region
        %p247 = scmp.lt.s32.totalorder %s13, 1
        %s248 = scalar_select %p247, %s13, 1
        %s249 = smul.addr %s248, 3
        %s250 = smul.addr %s249, 8
        %s251 = scalar_lea.vmem %s4, %s250
      $region40: #{uunet_loss.3} parent=19 // pred_fallthru
        _
    $region20: #{uunet_loss.3} parent=5 // pred_fallthru
      _
    %p252 = scmp.le.s32.totalorder 1, %s13
    %p253 = scmp.lt.s32.totalorder %s13, 3
    %p254 = pnand %p252, %p253
    %p255 = pneg %p254
    // Predicated region
    $region41: #{uunet_loss.3} parent=5 // pred_check
      _
    $region42: #{uunet_loss.3} parent=5 // pred_check_branch
      %257 = sbr.rel (%p254) target = $region44
    $region43: #{uunet_loss.3} parent=5 // pred_region
      %s258 = ssub.s32 %s13, 1
      %p259 = scmp.lt.s32.totalorder %s18, 1
      %s260 = scalar_select %p259, %s18, 1
      %s261 = smul.addr %s260, 2
      %s262 = smul.addr %s261, 8
      %s263 = scalar_lea.vmem %s0, %s262
      %p264 = pneg %p39
      %p265 = pneg %p36
      %p266 = scmp.lt.s32.totalorder %s18, 1
      %s267 = scalar_select %p266, %s18, 1
      %s268 = smul.addr %s267, 2
      %s269 = smul.addr %s268, 8
      %s270 = scalar_lea.vmem %s1, %s269
      %p271 = pneg %p65
      %p272 = pneg %p62
      %p273 = scmp.lt.s32.totalorder %s18, 1
      %s274 = scalar_select %p273, %s18, 1
      %s275 = smul.addr %s274, 2
      %s276 = smul.addr %s275, 8
      %s277 = scalar_lea.vmem %s2, %s276
      %p278 = pneg %p91
      %p279 = pneg %p88
      %p280 = scmp.lt.s32.totalorder %s18, 1
      %s281 = scalar_select %p280, %s18, 1
      %s282 = smul.addr %s281, 2
      %s283 = smul.addr %s282, 8
      %s284 = scalar_lea.vmem %s3, %s283
      %p285 = pneg %p117
      %p286 = pneg %p114
      %p287 = scmp.lt.s32.totalorder %s18, 1
      %s288 = scalar_select %p287, %s18, 1
      %s289 = smul.addr %s288, 3
      %s290 = smul.addr %s289, 8
      %s291 = scalar_lea.vmem %s4, %s290
      %p292 = pneg %p143
      %p293 = pneg %p140
      %p294 = pneg %p164
      %p295 = pneg %p161
      %p296 = pneg %p190
      %p297 = pneg %p187
      %p298 = scmp.lt.s32.totalorder %s18, 1
      %s299 = scalar_select %p298, %s18, 1
      %s300 = smul.addr %s299, 8
      %s301 = scalar_lea.vmem %s6, %s300
      %p302 = scmp.lt.s32.totalorder %s18, 1
      %s303 = scalar_select %p302, %s18, 1
      %s304 = smul.addr %s303, 2
      %s305 = smul.addr %s304, 8
      %s306 = scalar_lea.vmem %s0, %s305
      %p307 = scmp.lt.s32.totalorder %s18, 1
      %s308 = scalar_select %p307, %s18, 1
      %s309 = smul.addr %s308, 2
      %s310 = smul.addr %s309, 8
      %s311 = scalar_lea.vmem %s1, %s310
      %p312 = scmp.lt.s32.totalorder %s18, 1
      %s313 = scalar_select %p312, %s18, 1
      %s314 = smul.addr %s313, 2
      %s315 = smul.addr %s314, 8
      %s316 = scalar_lea.vmem %s2, %s315
      %p317 = scmp.lt.s32.totalorder %s18, 1
      %s318 = scalar_select %p317, %s18, 1
      %s319 = smul.addr %s318, 2
      %s320 = smul.addr %s319, 8
      %s321 = scalar_lea.vmem %s3, %s320
      %p322 = scmp.lt.s32.totalorder %s18, 1
      %s323 = scalar_select %p322, %s18, 1
      %s324 = smul.addr %s323, 3
      %s325 = smul.addr %s324, 8
      %s326 = scalar_lea.vmem %s4, %s325
      %p327 = scmp.lt.s32.totalorder %s18, 1
      %s328 = scalar_select %p327, %s18, 1
      %s329 = smul.addr %s328, 8
      %s330 = scalar_lea.vmem %s6, %s329
      %v331 = vld [vmem:[%s326] sm:$0xff]
      %v332 = vld [vmem:[%s326 + $0x8] sm:$0xff]
      %v333 = vld [vmem:[%s326 + $0x10] sm:$0xff]
      %334 = vrot.lane.b32.xlu0 %v331, 1
      %v335 = vpop.permute.xlu0 %334
      %336 = vrot.lane.b32.xlu0 %v332, 1
      %v337 = vpop.permute.xlu0 %336
      %338 = vrot.lane.b32.xlu0 %v333, 1
      %v339 = vpop.permute.xlu0 %338
      %340 = vrot.lane.b32.xlu0 %v331, 127
      %v341 = vpop.permute.xlu0 %340
      %342 = vrot.lane.b32.xlu0 %v332, 127
      %v343 = vpop.permute.xlu0 %342
      %344 = vrot.lane.b32.xlu0 %v333, 127
      %v345 = vpop.permute.xlu0 %344
      %v346 = vsub.f32 %v335, %v341
      %v347 = vsub.f32 %v337, %v343
      %v348 = vsub.f32 %v339, %v345
      %v349 = vmul.f32 %v331, 2.0
      %v350 = vmul.f32 %v332, 2.0
      %v351 = vmul.f32 %v333, 2.0
      %v352 = vadd.f32 %v335, %v349
      %v353 = vadd.f32 %v337, %v350
      %v354 = vadd.f32 %v339, %v351
      %v355 = vadd.f32 %v352, %v341
      %v356 = vadd.f32 %v353, %v343
      %v357 = vadd.f32 %v354, %v345
      %v358 = vrot.slane %v346, 7
      %v359 = vrot.slane %v347, 7
      %v360 = vrot.slane %v348, 7
      %v361 = vlaneseq
      %v362 = vshrl.u32 %v361, 7
      %vm363 = vcmp.lt.s32.totalorder %v362, 1
      %v364 = vsel %vm363, %v358, %v359
      %v365 = vsel %vm363, %v360, %v358
      %v366 = vmul.f32 %v346, 2.0
      %v367 = vmul.f32 %v347, 2.0
      %v368 = vadd.f32 %v365, %v366
      %v369 = vadd.f32 %v364, %v367
      %v370 = vrot.slane %v346, 1
      %v371 = vrot.slane %v347, 1
      %v372 = vrot.slane %v348, 1
      %vm373 = vcmp.lt.s32.totalorder %v362, 7
      %v374 = vsel %vm373, %v371, %v372
      %v375 = vsel %vm373, %v370, %v371
      %v376 = vadd.f32 %v368, %v375
      %v377 = vadd.f32 %v369, %v374
      %v378 = vrot.slane %v355, 7
      %v379 = vrot.slane %v356, 7
      %v380 = vrot.slane %v357, 7
      %v381 = vsel %vm363, %v378, %v379
      %v382 = vsel %vm363, %v380, %v378
      %v383 = vrot.slane %v355, 1
      %v384 = vrot.slane %v356, 1
      %v385 = vrot.slane %v357, 1
      %v386 = vsel %vm373, %v384, %v385
      %v387 = vsel %vm373, %v383, %v384
      %v388 = vsub.f32 %v382, %v387
      %v389 = vsub.f32 %v381, %v386
      %v390 = vmul.f32 %v376, %v376
      %v391 = vmul.f32 %v377, %v377
      %v392 = vmul.f32 %v388, %v388
      %v393 = vmul.f32 %v389, %v389
      %v394 = vadd.f32 %v390, %v392
      %v395 = vadd.f32 %v391, %v393
      %v396 = vmax.f32 %v335, %v331
      %v397 = vmax.f32 %v337, %v332
      %v398 = vmax.f32 %v339, %v333
      %v399 = vmax.f32 %v396, %v341
      %v400 = vmax.f32 %v397, %v343
      %v401 = vmax.f32 %v398, %v345
      %v402 = vrot.slane %v399, 7
      %v403 = vrot.slane %v400, 7
      %v404 = vrot.slane %v401, 7
      %v405 = vsel %vm363, %v403, %v404
      %v406 = vsel %vm363, %v402, %v403
      %v407 = vsel %vm363, %v404, %v402
      %v408 = vmax.f32 %v407, %v399
      %v409 = vmax.f32 %v406, %v400
      %v410 = vmax.f32 %v405, %v401
      %v411 = vrot.slane %v399, 1
      %v412 = vrot.slane %v400, 1
      %v413 = vrot.slane %v401, 1
      %v414 = vsel %vm373, %v412, %v413
      %v415 = vsel %vm373, %v411, %v412
      %v416 = vsel %vm373, %v413, %v411
      %v417 = vmax.f32 %v408, %v415
      %v418 = vmax.f32 %v409, %v414
      %v419 = vmax.f32 %v410, %v416
      %420 = vrot.lane.b32.xlu0 %v417, 1
      %v421 = vpop.permute.xlu0 %420
      %422 = vrot.lane.b32.xlu0 %v418, 1
      %v423 = vpop.permute.xlu0 %422
      %424 = vrot.lane.b32.xlu0 %v419, 1
      %v425 = vpop.permute.xlu0 %424
      %426 = vrot.lane.b32.xlu0 %v417, 127
      %v427 = vpop.permute.xlu0 %426
      %428 = vrot.lane.b32.xlu0 %v418, 127
      %v429 = vpop.permute.xlu0 %428
      %430 = vrot.lane.b32.xlu0 %v419, 127
      %v431 = vpop.permute.xlu0 %430
      %v432 = vmax.f32 %v421, %v417
      %v433 = vmax.f32 %v423, %v418
      %v434 = vmax.f32 %v425, %v419
      %v435 = vmax.f32 %v432, %v427
      %v436 = vmax.f32 %v433, %v429
      %v437 = vmax.f32 %v434, %v431
      %v438 = vrot.slane %v435, 7
      %v439 = vrot.slane %v436, 7
      %v440 = vrot.slane %v437, 7
      %v441 = vsel %vm363, %v438, %v439
      %v442 = vsel %vm363, %v440, %v438
      %v443 = vmax.f32 %v442, %v435
      %v444 = vmax.f32 %v441, %v436
      %v445 = vrot.slane %v435, 1
      %v446 = vrot.slane %v436, 1
      %v447 = vrot.slane %v437, 1
      %v448 = vsel %vm373, %v446, %v447
      %v449 = vsel %vm373, %v445, %v446
      %v450 = vmax.f32 %v443, %v449
      %v451 = vmax.f32 %v444, %v448
      %s452 = sld [smem:[#allocation2]]
      %v453 = vstv %s452
      %vm454 = vcmp.gt.f32.partialorder %v394, %v453
      %vm455 = vcmp.gt.f32.partialorder %v395, %v453
      %v456 = vsel %vm454, 1.0, 0.0
      %v457 = vsel %vm455, 1.0, 0.0
      %v458 = vsub.f32 %v349, %v456
      %v459 = vsub.f32 %v350, %v457
      %vm460 = vcmp.eq.f32.partialorder %v458, 1.0
      %vm461 = vcmp.eq.f32.partialorder %v459, 1.0
      %v462 = vsel %vm460, 1.0, 0.0
      %v463 = vsel %vm461, 1.0, 0.0
      %v464 = vld [vmem:[%s306] sm:$0xff]
      %v465 = vld [vmem:[%s306 + $0x8] sm:$0xff]
      %vm466 = vcmp.gt.f32.partialorder %v331, 0.5
      %vm467 = vcmp.gt.f32.partialorder %v332, 0.5
      %v468 = vsub.f32 1.0, %v464
      %v469 = vsub.f32 1.0, %v465
      %v470 = vsel %vm466, %v464, %v468
      %v471 = vsel %vm467, %v465, %v469
      %v472 = vlog2.pop %v470
      %v473 = vmul.f32 %v472, 0.6931472
      %v474 = vlog2.pop %v471
      %v475 = vmul.f32 %v474, 0.6931472
      %v476 = vmax.f32 %v473, -100.0
      %v477 = vmax.f32 %v475, -100.0
      %v478 = vsub.f32 0.0, %v476
      %v479 = vsub.f32 0.0, %v477
      %vm480 = vcmask 130048
      %v481 = vsel %vm480, %v478, 0.0
      %v482 = vsel %vm480, %v479, 0.0
      %v483 = vadd.f32 %v481, %v482
      %484 = vadd.xlane.f32.xlu0 %v483
      %v485 = vpop.xlane.xlu0 %484
      %v486 = vrot.slane %v485, 4
      %v487 = vadd.f32 %v485, %v486
      %v488 = vrot.slane %v487, 2
      %v489 = vadd.f32 %v487, %v488
      %v490 = vrot.slane %v489, 1
      %v491 = vadd.f32 %v489, %v490
      %s492 = vtos %v491
      %v493 = vld [vmem:[%s311] sm:$0xff]
      %v494 = vld [vmem:[%s311 + $0x8] sm:$0xff]
      %vm495 = vcmp.gt.f32.partialorder %v417, 0.5
      %vm496 = vcmp.gt.f32.partialorder %v418, 0.5
      %v497 = vsub.f32 1.0, %v493
      %v498 = vsub.f32 1.0, %v494
      %v499 = vsel %vm495, %v493, %v497
      %v500 = vsel %vm496, %v494, %v498
      %v501 = vlog2.pop %v499
      %v502 = vmul.f32 %v501, 0.6931472
      %v503 = vlog2.pop %v500
      %v504 = vmul.f32 %v503, 0.6931472
      %v505 = vmax.f32 %v502, -100.0
      %v506 = vmax.f32 %v504, -100.0
      %v507 = vsub.f32 0.0, %v505
      %v508 = vsub.f32 0.0, %v506
      %v509 = vsel %vm480, %v507, 0.0
      %v510 = vsel %vm480, %v508, 0.0
      %v511 = vadd.f32 %v509, %v510
      %512 = vadd.xlane.f32.xlu0 %v511
      %v513 = vpop.xlane.xlu0 %512
      %v514 = vrot.slane %v513, 4
      %v515 = vadd.f32 %v513, %v514
      %v516 = vrot.slane %v515, 2
      %v517 = vadd.f32 %v515, %v516
      %v518 = vrot.slane %v517, 1
      %v519 = vadd.f32 %v517, %v518
      %s520 = vtos %v519
      %v521 = vld [vmem:[%s316] sm:$0xff]
      %v522 = vld [vmem:[%s316 + $0x8] sm:$0xff]
      %vm523 = vcmp.gt.f32.partialorder %v450, 0.5
      %vm524 = vcmp.gt.f32.partialorder %v451, 0.5
      %v525 = vsub.f32 1.0, %v521
      %v526 = vsub.f32 1.0, %v522
      %v527 = vsel %vm523, %v521, %v525
      %v528 = vsel %vm524, %v522, %v526
      %v529 = vlog2.pop %v527
      %v530 = vmul.f32 %v529, 0.6931472
      %v531 = vlog2.pop %v528
      %v532 = vmul.f32 %v531, 0.6931472
      %v533 = vmax.f32 %v530, -100.0
      %v534 = vmax.f32 %v532, -100.0
      %v535 = vsub.f32 0.0, %v533
      %v536 = vsub.f32 0.0, %v534
      %v537 = vsel %vm480, %v535, 0.0
      %v538 = vsel %vm480, %v536, 0.0
      %v539 = vadd.f32 %v537, %v538
      %540 = vadd.xlane.f32.xlu0 %v539
      %v541 = vpop.xlane.xlu0 %540
      %v542 = vrot.slane %v541, 4
      %v543 = vadd.f32 %v541, %v542
      %v544 = vrot.slane %v543, 2
      %v545 = vadd.f32 %v543, %v544
      %v546 = vrot.slane %v545, 1
      %v547 = vadd.f32 %v545, %v546
      %s548 = vtos %v547
      %v549 = vld [vmem:[%s321] sm:$0xff]
      %v550 = vld [vmem:[%s321 + $0x8] sm:$0xff]
      %vm551 = vcmp.gt.f32.partialorder %v462, 0.5
      %vm552 = vcmp.gt.f32.partialorder %v463, 0.5
      %v553 = vsub.f32 1.0, %v549
      %v554 = vsub.f32 1.0, %v550
      %v555 = vsel %vm551, %v549, %v553
      %v556 = vsel %vm552, %v550, %v554
      %v557 = vlog2.pop %v555
      %v558 = vmul.f32 %v557, 0.6931472
      %v559 = vlog2.pop %v556
      %v560 = vmul.f32 %v559, 0.6931472
      %v561 = vmax.f32 %v558, -100.0
      %v562 = vmax.f32 %v560, -100.0
      %v563 = vsub.f32 0.0, %v561
      %v564 = vsub.f32 0.0, %v562
      %v565 = vsel %vm480, %v563, 0.0
      %v566 = vsel %vm480, %v564, 0.0
      %v567 = vadd.f32 %v565, %v566
      %568 = vadd.xlane.f32.xlu0 %v567
      %v569 = vpop.xlane.xlu0 %568
      %v570 = vrot.slane %v569, 4
      %v571 = vadd.f32 %v569, %v570
      %v572 = vrot.slane %v571, 2
      %v573 = vadd.f32 %v571, %v572
      %v574 = vrot.slane %v573, 1
      %v575 = vadd.f32 %v573, %v574
      %s576 = vtos %v575
      %v577 = vlaneseq
      %v578 = vand.u32 %v577, 127
      %vm579 = vcmp.eq.s32.totalorder %v578, 0
      %v580 = vstv %s492
      %v581 = vsel %vm579, %v580, 0.0
      %vm582 = vcmp.eq.s32.totalorder %v578, 1
      %v583 = vstv %s520
      %v584 = vsel %vm582, %v583, 0.0
      %v585 = vadd.f32 %v581, %v584
      %vm586 = vcmp.eq.s32.totalorder %v578, 2
      %v587 = vstv %s548
      %v588 = vsel %vm586, %v587, 0.0
      %v589 = vadd.f32 %v585, %v588
      %vm590 = vcmp.eq.s32.totalorder %v578, 3
      %v591 = vstv %s576
      %v592 = vsel %vm590, %v591, 0.0
      %v593 = vadd.f32 %v589, %v592
      %594 = vst [vmem:[%s330] sm:$0xff] %v593
      %p595 = scmp.lt.s32.totalorder %s18, 1
      %s596 = scalar_select %p595, %s18, 1
      %s597 = smul.addr %s596, 8
      %s598 = scalar_lea.vmem %s6, %s597
      // Predicated region
      $region45: #{uunet_loss.3} parent=43 // pred_check
        %p599 = pneg %p187
      $region46: #{uunet_loss.3} parent=43 // pred_check_branch
        %601 = sbr.rel (%p599) target = $region48
      $region47: #{uunet_loss.3} parent=43 // pred_region
        _
      $region48: #{uunet_loss.3} parent=43 // pred_fallthru
        _
    $region44: #{uunet_loss.3} parent=5 // pred_fallthru
      _
    %p602 = scmp.le.s32.totalorder 2, %s13
    // Predicated region
    $region49: #{uunet_loss.3} parent=5 // pred_check
      %p603 = pneg %p602
    $region50: #{uunet_loss.3} parent=5 // pred_check_branch
      %605 = sbr.rel (%p603) target = $region52
    $region51: #{uunet_loss.3} parent=5 // pred_region
      %s606 = ssub.s32 %s13, 2
      // Predicated region
      $region53: #{uunet_loss.3} parent=51 // pred_check
        %p607 = pneg %p193
      $region54: #{uunet_loss.3} parent=51 // pred_check_branch
        %609 = sbr.rel (%p607) target = $region56
      $region55: #{uunet_loss.3} parent=51 // pred_region
        %p610 = scmp.lt.s32.totalorder %s19, 1
        %s611 = scalar_select %p610, %s19, 1
        %s612 = smul.addr %s611, 8
        %s613 = scalar_lea.vmem %s6, %s612
      $region56: #{uunet_loss.3} parent=51 // pred_fallthru
        _
    $region52: #{uunet_loss.3} parent=5 // pred_fallthru
      _
  $region6: #{uunet_loss.3} parent=0 // loop_footer
    %s17 = sadd.s32 1, %s13
  $region7: #{uunet_loss.3} parent=0 // loop_footer_branch
    %12 = sbr.rel target = $region3
  $region8: #{uunet_loss.3} parent=0 // loop_exit
    _

</llo_original>
